<compile_context>
chip_gen: v5e
topology: v5e:2x2
jax: 0.10.0
libtpu: 0.0.40
codegen_flags: <defaults>
</compile_context>

<pallas_src>
import functools
import math

import jax
import jax.numpy as jnp
from jax.experimental import pallas as pl
from jax.experimental.pallas import tpu as pltpu


_LANE = 128
_SUBLANE = 8


def _round_up(x, m):
    return (x + m - 1) // m * m


# ----------------------------- Pallas kernel -------------------------------

def _fused_mlp_kernel(x_ref, *refs, cfgs, real_douts):
    """All layers fused: y_{l+1} = LN(act(y_l @ W_l^T + b_l) [+ y_l]).

    refs = (w0, p0, w1, p1, ..., w{L-1}, p{L-1}, out_ref)
      w_l : (din_pad, dout_pad)  pre-transposed weight, zero padded
      p_l : (8, dout_pad)        rows: 0=bias, 1=gamma, 2=beta (zero padded)
    """
    o_ref = refs[-1]
    param_refs = refs[:-1]

    y = x_ref[...].astype(jnp.float32)                      # (tm, din_pad)

    for li, cfg in enumerate(cfgs):
        w_ref = param_refs[2 * li]
        p_ref = param_refs[2 * li + 1]
        dout_pad = w_ref.shape[1]
        dout_real = real_douts[li]

        x_in = y
        y = jnp.dot(x_in, w_ref[...], preferred_element_type=jnp.float32)  # MXU
        p = p_ref[...]                                       # (8, dout_pad)
        y = y + p[0:1, :]                                    # bias

        act = cfg['activation']
        if act == 'sigmoid':
            y = jax.nn.sigmoid(y)
        elif act == 'relu':
            y = jnp.maximum(y, 0.0)
        elif act == 'tanh':
            y = jnp.tanh(y)
        elif act == 'leakyrelu':
            # negative_slope=0.2 per the RLE get_activation_function
            # (PyTorch nn.LeakyReLU default would be 0.01).
            y = jnp.where(y > 0, y, 0.2 * y)
        else:
            raise ValueError(f"unsupported activation {act}")

        # Keep padded lanes exactly zero so they never pollute LN stats,
        # skip connections or the final output.
        if dout_real != dout_pad:
            lane = jax.lax.broadcasted_iota(jnp.int32, (1, dout_pad), 1)
            y = jnp.where(lane < dout_real, y, 0.0)

        # TODO(synk): train-mode dropout omitted (dropout_rate=None / eval).

        if cfg['skip_connection']:
            y = y + x_in

        if cfg['use_layernorm']:
            inv_d = 1.0 / float(dout_real)
            mean = jnp.sum(y, axis=-1, keepdims=True) * inv_d
            mean_sq = jnp.sum(y * y, axis=-1, keepdims=True) * inv_d
            var = mean_sq - mean * mean                      # one-pass variance
            y = (y - mean) * jax.lax.rsqrt(var + 1e-5)       # PyTorch LN eps
            y = y * p[1:2, :] + p[2:3, :]                    # gamma, beta (pad=0)

    o_ref[...] = y.astype(o_ref.dtype)


# ------------------------------- wrapper ------------------------------------

def multilayer_ffn_forward(x, params, cfgs, *, tm=256):
    """x: [batch, ..., input_dim] -> [batch, ..., output_dim] (fused kernel)."""
    lead = x.shape[:-1]
    din_real = x.shape[-1]
    x2d = x.reshape(-1, din_real)
    n = x2d.shape[0]

    # --- pad rows (sublane axis) and features (lane axis) ---
    din_pad = _round_up(din_real, _LANE)
    tm_eff = min(tm, _round_up(n, _SUBLANE))
    n_pad = _round_up(n, tm_eff)
    x_pad = jnp.zeros((n_pad, din_pad), x2d.dtype).at[:n, :din_real].set(x2d)

    flat_inputs = [x_pad]
    in_specs = [pl.BlockSpec((tm_eff, din_pad), lambda i: (i, 0))]
    real_douts = []
    prev_pad = din_pad
    for p in params:
        din_r, dout_r = p['w_t'].shape
        dout_pad = _round_up(dout_r, _LANE)
        w_pad = (jnp.zeros((prev_pad, dout_pad), jnp.float32)
                 .at[:din_r, :dout_r].set(p['w_t']))
        bgb = jnp.zeros((8, dout_pad), jnp.float32)
        bgb = bgb.at[0, :dout_r].set(p['b'].reshape(-1))
        bgb = bgb.at[1, :dout_r].set(p['gamma'].reshape(-1))
        bgb = bgb.at[2, :dout_r].set(p['beta'].reshape(-1))
        flat_inputs += [w_pad, bgb]
        in_specs += [
            pl.BlockSpec((prev_pad, dout_pad), lambda i: (0, 0)),  # weight (VMEM)
            pl.BlockSpec((8, dout_pad), lambda i: (0, 0)),         # bias/gamma/beta
        ]
        real_douts.append(dout_r)
        prev_pad = dout_pad

    dout_last_real = real_douts[-1]
    dout_last_pad = prev_pad

    kernel = functools.partial(
        _fused_mlp_kernel,
        cfgs=tuple(dict(c) for c in cfgs),
        real_douts=tuple(real_douts),
    )

    out = pl.pallas_call(
        kernel,
        out_shape=jax.ShapeDtypeStruct((n_pad, dout_last_pad), x.dtype),
        grid=(n_pad // tm_eff,),
        in_specs=in_specs,
        out_specs=pl.BlockSpec((tm_eff, dout_last_pad), lambda i: (i, 0)),
        compiler_params=pltpu.CompilerParams(
            dimension_semantics=("parallel",)),
    )(*flat_inputs)

    return out[:n, :dout_last_real].reshape(lead + (dout_last_real,))


# ----------------------- parameter init (deterministic) --------------------

def _init_single_layer(key, in_dim, out_dim):
    kw, kb = jax.random.split(key)
    # xavier_uniform_ on torch weight [out, in]; stored as W^T = [in, out].
    limit = math.sqrt(6.0 / (in_dim + out_dim))
    w_t = jax.random.uniform(kw, (in_dim, out_dim), jnp.float32, -limit, limit)
    # default nn.Linear bias init: U(-1/sqrt(in), 1/sqrt(in))
    bound = 1.0 / math.sqrt(in_dim)
    b = jax.random.uniform(kb, (1, out_dim), jnp.float32, -bound, bound)
    gamma = jnp.ones((1, out_dim), jnp.float32)   # nn.LayerNorm weight
    beta = jnp.zeros((1, out_dim), jnp.float32)   # nn.LayerNorm bias
    return {'w_t': w_t, 'b': b, 'gamma': gamma, 'beta': beta}


def build_multilayer_ffn(key, input_dim, output_dim, num_hidden_layers,
                         hidden_dim, activation, use_layernormalize,
                         skip_connection):
    """Mirror MultiLayerFeedForwardNN.__init__ layer construction."""
    cfgs, params = [], []
    keys = jax.random.split(key, max(num_hidden_layers + 1, 1))

    def layer_cfg(in_d, out_d, ln, skip):
        # SingleFeedForwardNN: skip only if in_dim == out_dim
        return dict(activation=activation,
                    use_layernorm=ln,
                    skip_connection=(skip and in_d == out_d))

    if num_hidden_layers <= 0:
        params.append(_init_single_layer(keys[0], input_dim, output_dim))
        cfgs.append(layer_cfg(input_dim, output_dim, False, False))
    else:
        params.append(_init_single_layer(keys[0], input_dim, hidden_dim))
        cfgs.append(layer_cfg(input_dim, hidden_dim, use_layernormalize,
                              skip_connection))
        for i in range(num_hidden_layers - 1):
            params.append(_init_single_layer(keys[i + 1], hidden_dim, hidden_dim))
            cfgs.append(layer_cfg(hidden_dim, hidden_dim, use_layernormalize,
                                  skip_connection))
        params.append(_init_single_layer(keys[num_hidden_layers],
                                         hidden_dim, output_dim))
        cfgs.append(layer_cfg(hidden_dim, output_dim, False, False))
    return params, cfgs


# --------------------------- pure-JAX reference -----------------------------

def _ref_forward(x, params, cfgs):
    lead = x.shape[:-1]
    out = x.reshape(-1, x.shape[-1])
    for p, cfg in zip(params, cfgs):
        y = out @ p['w_t'] + p['b']
        act = cfg['activation']
        if act == 'sigmoid':
            y = jax.nn.sigmoid(y)
        elif act == 'relu':
            y = jnp.maximum(y, 0.0)
        elif act == 'tanh':
            y = jnp.tanh(y)
        elif act == 'leakyrelu':
            y = jnp.where(y > 0, y, 0.2 * y)
        else:
            raise ValueError(f"unsupported activation {act}")
        if cfg['skip_connection']:
            y = y + out
        if cfg['use_layernorm']:
            m = jnp.mean(y, -1, keepdims=True)
            v = jnp.mean((y - m) ** 2, -1, keepdims=True)
            y = (y - m) / jnp.sqrt(v + 1e-5) * p['gamma'] + p['beta']
        out = y
    return out.reshape(lead + (out.shape[-1],))


# --------------------------------- main -------------------------------------

if __name__ == "__main__":
    key = jax.random.PRNGKey(0)
    k_x, k_p = jax.random.split(key)

    # MultiLayerFeedForwardNN(input_dim=16, output_dim=8, num_hidden_layers=2,
    #                         dropout_rate=None, hidden_dim=32,
    #                         activation='sigmoid', use_layernormalize=True,
    #                         skip_connection=True)
    input_dim, output_dim, hidden_dim, num_hidden_layers = 16, 8, 32, 2
    batch, seq = 2, 8

    x = jax.random.normal(k_x, (batch, seq, input_dim), jnp.float32)
    params, cfgs = build_multilayer_ffn(
        k_p, input_dim, output_dim, num_hidden_layers, hidden_dim,
        activation='sigmoid', use_layernormalize=True, skip_connection=True)

    out = multilayer_ffn_forward(x, params, cfgs)
    out = jax.block_until_ready(out)

    ref = _ref_forward(x, params, cfgs)
    assert out.shape == (batch, seq, output_dim)
    assert jnp.allclose(out, ref, atol=1e-4, rtol=1e-4), "mismatch vs reference"

    print("KERNEL_OK")
</pallas_src>

<mosaic_0001>
module attributes {stable_mosaic.version = 11 : i64} {
  func.func @_fused_mlp_kernel(%arg0: i32, %arg1: memref<16x128xf32, #tpu.memory_space<vmem>>, %arg2: memref<128x128xf32, #tpu.memory_space<vmem>>, %arg3: memref<8x128xf32, #tpu.memory_space<vmem>>, %arg4: memref<128x128xf32, #tpu.memory_space<vmem>>, %arg5: memref<8x128xf32, #tpu.memory_space<vmem>>, %arg6: memref<128x128xf32, #tpu.memory_space<vmem>>, %arg7: memref<8x128xf32, #tpu.memory_space<vmem>>, %arg8: memref<16x128xf32, #tpu.memory_space<vmem>>) attributes {dimension_semantics = [#tpu.dimension_semantics<parallel>], iteration_bounds = array<i64: 1>, scalar_prefetch = 0 : i64, scratch_operands = 0 : i64, tpu.core_type = #tpu.core_type<tc>, window_params = [{transform_indices = @transform_0, window_bounds = array<i64: 16, 128>}, {pipeline_mode = #tpu.pipeline_mode<synchronous>, transform_indices = @transform_1, window_bounds = array<i64: 128, 128>}, {pipeline_mode = #tpu.pipeline_mode<synchronous>, transform_indices = @transform_2, window_bounds = array<i64: 8, 128>}, {pipeline_mode = #tpu.pipeline_mode<synchronous>, transform_indices = @transform_3, window_bounds = array<i64: 128, 128>}, {pipeline_mode = #tpu.pipeline_mode<synchronous>, transform_indices = @transform_4, window_bounds = array<i64: 8, 128>}, {pipeline_mode = #tpu.pipeline_mode<synchronous>, transform_indices = @transform_5, window_bounds = array<i64: 128, 128>}, {pipeline_mode = #tpu.pipeline_mode<synchronous>, transform_indices = @transform_6, window_bounds = array<i64: 8, 128>}, {transform_indices = @transform_7, window_bounds = array<i64: 16, 128>}]} {
    %c0 = arith.constant 0 : index
    %c0_0 = arith.constant 0 : index
    %0 = vector.load %arg1[%c0, %c0_0] : memref<16x128xf32, #tpu.memory_space<vmem>>, vector<16x128xf32>
    %c0_1 = arith.constant 0 : index
    %c0_2 = arith.constant 0 : index
    %1 = vector.load %arg2[%c0_1, %c0_2] : memref<128x128xf32, #tpu.memory_space<vmem>>, vector<128x128xf32>
    %cst = arith.constant dense<0.000000e+00> : vector<16x128xf32>
    %2 = tpu.matmul %0, %1, %cst {dimension_numbers = #tpu.dot_dimension_numbers<[1], [0], [0], [1], [0, 0, 1, 1], [], []>} : vector<16x128xf32>, vector<128x128xf32>, vector<16x128xf32> -> vector<16x128xf32>
    %c0_3 = arith.constant 0 : index
    %c0_4 = arith.constant 0 : index
    %3 = vector.load %arg3[%c0_3, %c0_4] : memref<8x128xf32, #tpu.memory_space<vmem>>, vector<8x128xf32>
    %4 = vector.extract_strided_slice %3 {offsets = [0, 0], sizes = [1, 128], strides = [1, 1]} : vector<8x128xf32> to vector<1x128xf32>
    %5 = vector.broadcast %4 : vector<1x128xf32> to vector<16x128xf32>
    %6 = arith.addf %2, %5 : vector<16x128xf32>
    %7 = arith.negf %6 : vector<16x128xf32>
    %8 = math.exp %7 : vector<16x128xf32>
    %cst_5 = arith.constant 1.000000e+00 : f32
    %9 = vector.broadcast %cst_5 : f32 to vector<16x128xf32>
    %10 = arith.addf %9, %8 : vector<16x128xf32>
    %11 = arith.divf %9, %10 : vector<16x128xf32>
    %12 = tpu.iota {dimensions = array<i32: 1>} : vector<1x128xi32>
    %c32_i32 = arith.constant 32 : i32
    %13 = vector.broadcast %c32_i32 : i32 to vector<1x128xi32>
    %14 = arith.cmpi slt, %12, %13 : vector<1x128xi32>
    %cst_6 = arith.constant 0.000000e+00 : f32
    %15 = vector.shape_cast %14 : vector<1x128xi1> to vector<1x128xi1>
    %16 = vector.broadcast %15 : vector<1x128xi1> to vector<16x128xi1>
    %17 = vector.broadcast %cst_6 : f32 to vector<16x128xf32>
    %18 = arith.select %16, %11, %17 : vector<16x128xi1>, vector<16x128xf32>
    %cst_7 = arith.constant dense<0.000000e+00> : vector<16xf32>
    %19 = vector.multi_reduction <add>, %18, %cst_7 [1] : vector<16x128xf32> to vector<16xf32>
    %20 = vector.shape_cast %19 : vector<16xf32> to vector<16x1xf32>
    %cst_8 = arith.constant 3.125000e-02 : f32
    %21 = vector.broadcast %cst_8 : f32 to vector<16x1xf32>
    %22 = arith.mulf %20, %21 : vector<16x1xf32>
    %23 = arith.mulf %18, %18 : vector<16x128xf32>
    %cst_9 = arith.constant dense<0.000000e+00> : vector<16xf32>
    %24 = vector.multi_reduction <add>, %23, %cst_9 [1] : vector<16x128xf32> to vector<16xf32>
    %25 = vector.shape_cast %24 : vector<16xf32> to vector<16x1xf32>
    %cst_10 = arith.constant 3.125000e-02 : f32
    %26 = vector.broadcast %cst_10 : f32 to vector<16x1xf32>
    %27 = arith.mulf %25, %26 : vector<16x1xf32>
    %28 = arith.mulf %22, %22 : vector<16x1xf32>
    %29 = arith.subf %27, %28 : vector<16x1xf32>
    %30 = vector.broadcast %22 : vector<16x1xf32> to vector<16x128xf32>
    %31 = arith.subf %18, %30 : vector<16x128xf32>
    %cst_11 = arith.constant 9.99999974E-6 : f32
    %32 = vector.broadcast %cst_11 : f32 to vector<16x1xf32>
    %33 = arith.addf %29, %32 : vector<16x1xf32>
    %34 = math.rsqrt %33 : vector<16x1xf32>
    %35 = vector.broadcast %34 : vector<16x1xf32> to vector<16x128xf32>
    %36 = arith.mulf %31, %35 : vector<16x128xf32>
    %37 = vector.extract_strided_slice %3 {offsets = [1, 0], sizes = [1, 128], strides = [1, 1]} : vector<8x128xf32> to vector<1x128xf32>
    %38 = vector.broadcast %37 : vector<1x128xf32> to vector<16x128xf32>
    %39 = arith.mulf %36, %38 : vector<16x128xf32>
    %40 = vector.extract_strided_slice %3 {offsets = [2, 0], sizes = [1, 128], strides = [1, 1]} : vector<8x128xf32> to vector<1x128xf32>
    %41 = vector.broadcast %40 : vector<1x128xf32> to vector<16x128xf32>
    %42 = arith.addf %39, %41 : vector<16x128xf32>
    %c0_12 = arith.constant 0 : index
    %c0_13 = arith.constant 0 : index
    %43 = vector.load %arg4[%c0_12, %c0_13] : memref<128x128xf32, #tpu.memory_space<vmem>>, vector<128x128xf32>
    %cst_14 = arith.constant dense<0.000000e+00> : vector<16x128xf32>
    %44 = tpu.matmul %42, %43, %cst_14 {dimension_numbers = #tpu.dot_dimension_numbers<[1], [0], [0], [1], [0, 0, 1, 1], [], []>} : vector<16x128xf32>, vector<128x128xf32>, vector<16x128xf32> -> vector<16x128xf32>
    %c0_15 = arith.constant 0 : index
    %c0_16 = arith.constant 0 : index
    %45 = vector.load %arg5[%c0_15, %c0_16] : memref<8x128xf32, #tpu.memory_space<vmem>>, vector<8x128xf32>
    %46 = vector.extract_strided_slice %45 {offsets = [0, 0], sizes = [1, 128], strides = [1, 1]} : vector<8x128xf32> to vector<1x128xf32>
    %47 = vector.broadcast %46 : vector<1x128xf32> to vector<16x128xf32>
    %48 = arith.addf %44, %47 : vector<16x128xf32>
    %49 = arith.negf %48 : vector<16x128xf32>
    %50 = math.exp %49 : vector<16x128xf32>
    %cst_17 = arith.constant 1.000000e+00 : f32
    %51 = vector.broadcast %cst_17 : f32 to vector<16x128xf32>
    %52 = arith.addf %51, %50 : vector<16x128xf32>
    %53 = arith.divf %51, %52 : vector<16x128xf32>
    %54 = tpu.iota {dimensions = array<i32: 1>} : vector<1x128xi32>
    %c32_i32_18 = arith.constant 32 : i32
    %55 = vector.broadcast %c32_i32_18 : i32 to vector<1x128xi32>
    %56 = arith.cmpi slt, %54, %55 : vector<1x128xi32>
    %cst_19 = arith.constant 0.000000e+00 : f32
    %57 = vector.shape_cast %56 : vector<1x128xi1> to vector<1x128xi1>
    %58 = vector.broadcast %57 : vector<1x128xi1> to vector<16x128xi1>
    %59 = vector.broadcast %cst_19 : f32 to vector<16x128xf32>
    %60 = arith.select %58, %53, %59 : vector<16x128xi1>, vector<16x128xf32>
    %61 = arith.addf %60, %42 : vector<16x128xf32>
    %cst_20 = arith.constant dense<0.000000e+00> : vector<16xf32>
    %62 = vector.multi_reduction <add>, %61, %cst_20 [1] : vector<16x128xf32> to vector<16xf32>
    %63 = vector.shape_cast %62 : vector<16xf32> to vector<16x1xf32>
    %cst_21 = arith.constant 3.125000e-02 : f32
    %64 = vector.broadcast %cst_21 : f32 to vector<16x1xf32>
    %65 = arith.mulf %63, %64 : vector<16x1xf32>
    %66 = arith.mulf %61, %61 : vector<16x128xf32>
    %cst_22 = arith.constant dense<0.000000e+00> : vector<16xf32>
    %67 = vector.multi_reduction <add>, %66, %cst_22 [1] : vector<16x128xf32> to vector<16xf32>
    %68 = vector.shape_cast %67 : vector<16xf32> to vector<16x1xf32>
    %cst_23 = arith.constant 3.125000e-02 : f32
    %69 = vector.broadcast %cst_23 : f32 to vector<16x1xf32>
    %70 = arith.mulf %68, %69 : vector<16x1xf32>
    %71 = arith.mulf %65, %65 : vector<16x1xf32>
    %72 = arith.subf %70, %71 : vector<16x1xf32>
    %73 = vector.broadcast %65 : vector<16x1xf32> to vector<16x128xf32>
    %74 = arith.subf %61, %73 : vector<16x128xf32>
    %cst_24 = arith.constant 9.99999974E-6 : f32
    %75 = vector.broadcast %cst_24 : f32 to vector<16x1xf32>
    %76 = arith.addf %72, %75 : vector<16x1xf32>
    %77 = math.rsqrt %76 : vector<16x1xf32>
    %78 = vector.broadcast %77 : vector<16x1xf32> to vector<16x128xf32>
    %79 = arith.mulf %74, %78 : vector<16x128xf32>
    %80 = vector.extract_strided_slice %45 {offsets = [1, 0], sizes = [1, 128], strides = [1, 1]} : vector<8x128xf32> to vector<1x128xf32>
    %81 = vector.broadcast %80 : vector<1x128xf32> to vector<16x128xf32>
    %82 = arith.mulf %79, %81 : vector<16x128xf32>
    %83 = vector.extract_strided_slice %45 {offsets = [2, 0], sizes = [1, 128], strides = [1, 1]} : vector<8x128xf32> to vector<1x128xf32>
    %84 = vector.broadcast %83 : vector<1x128xf32> to vector<16x128xf32>
    %85 = arith.addf %82, %84 : vector<16x128xf32>
    %c0_25 = arith.constant 0 : index
    %c0_26 = arith.constant 0 : index
    %86 = vector.load %arg6[%c0_25, %c0_26] : memref<128x128xf32, #tpu.memory_space<vmem>>, vector<128x128xf32>
    %cst_27 = arith.constant dense<0.000000e+00> : vector<16x128xf32>
    %87 = tpu.matmul %85, %86, %cst_27 {dimension_numbers = #tpu.dot_dimension_numbers<[1], [0], [0], [1], [0, 0, 1, 1], [], []>} : vector<16x128xf32>, vector<128x128xf32>, vector<16x128xf32> -> vector<16x128xf32>
    %c0_28 = arith.constant 0 : index
    %c0_29 = arith.constant 0 : index
    %88 = vector.load %arg7[%c0_28, %c0_29] : memref<8x128xf32, #tpu.memory_space<vmem>>, vector<8x128xf32>
    %89 = vector.extract_strided_slice %88 {offsets = [0, 0], sizes = [1, 128], strides = [1, 1]} : vector<8x128xf32> to vector<1x128xf32>
    %90 = vector.broadcast %89 : vector<1x128xf32> to vector<16x128xf32>
    %91 = arith.addf %87, %90 : vector<16x128xf32>
    %92 = arith.negf %91 : vector<16x128xf32>
    %93 = math.exp %92 : vector<16x128xf32>
    %cst_30 = arith.constant 1.000000e+00 : f32
    %94 = vector.broadcast %cst_30 : f32 to vector<16x128xf32>
    %95 = arith.addf %94, %93 : vector<16x128xf32>
    %96 = arith.divf %94, %95 : vector<16x128xf32>
    %97 = tpu.iota {dimensions = array<i32: 1>} : vector<1x128xi32>
    %c8_i32 = arith.constant 8 : i32
    %98 = vector.broadcast %c8_i32 : i32 to vector<1x128xi32>
    %99 = arith.cmpi slt, %97, %98 : vector<1x128xi32>
    %cst_31 = arith.constant 0.000000e+00 : f32
    %100 = vector.shape_cast %99 : vector<1x128xi1> to vector<1x128xi1>
    %101 = vector.broadcast %100 : vector<1x128xi1> to vector<16x128xi1>
    %102 = vector.broadcast %cst_31 : f32 to vector<16x128xf32>
    %103 = arith.select %101, %96, %102 : vector<16x128xi1>, vector<16x128xf32>
    %c0_32 = arith.constant 0 : index
    %c0_33 = arith.constant 0 : index
    %104 = vector.load %arg8[%c0_32, %c0_33] : memref<16x128xf32, #tpu.memory_space<vmem>>, vector<16x128xf32>
    tpu.vector_store %arg8[%c0_32, %c0_33], %103 {strides = array<i32>} : memref<16x128xf32, #tpu.memory_space<vmem>>, vector<16x128xf32>,
    return
  }
  func.func @transform_0(%arg0: i32) -> (i32, i32) {
    %c0_i32 = arith.constant 0 : i32
    %c0_i32_0 = arith.constant 0 : i32
    return %arg0, %c0_i32 : i32, i32
  }
  func.func @transform_1(%arg0: i32) -> (i32, i32) {
    %c0_i32 = arith.constant 0 : i32
    %c0_i32_0 = arith.constant 0 : i32
    %c0_i32_1 = arith.constant 0 : i32
    return %c0_i32, %c0_i32_0 : i32, i32
  }
  func.func @transform_2(%arg0: i32) -> (i32, i32) {
    %c0_i32 = arith.constant 0 : i32
    %c0_i32_0 = arith.constant 0 : i32
    %c0_i32_1 = arith.constant 0 : i32
    return %c0_i32, %c0_i32_0 : i32, i32
  }
  func.func @transform_3(%arg0: i32) -> (i32, i32) {
    %c0_i32 = arith.constant 0 : i32
    %c0_i32_0 = arith.constant 0 : i32
    %c0_i32_1 = arith.constant 0 : i32
    return %c0_i32, %c0_i32_0 : i32, i32
  }
  func.func @transform_4(%arg0: i32) -> (i32, i32) {
    %c0_i32 = arith.constant 0 : i32
    %c0_i32_0 = arith.constant 0 : i32
    %c0_i32_1 = arith.constant 0 : i32
    return %c0_i32, %c0_i32_0 : i32, i32
  }
  func.func @transform_5(%arg0: i32) -> (i32, i32) {
    %c0_i32 = arith.constant 0 : i32
    %c0_i32_0 = arith.constant 0 : i32
    %c0_i32_1 = arith.constant 0 : i32
    return %c0_i32, %c0_i32_0 : i32, i32
  }
  func.func @transform_6(%arg0: i32) -> (i32, i32) {
    %c0_i32 = arith.constant 0 : i32
    %c0_i32_0 = arith.constant 0 : i32
    %c0_i32_1 = arith.constant 0 : i32
    return %c0_i32, %c0_i32_0 : i32, i32
  }
  func.func @transform_7(%arg0: i32) -> (i32, i32) {
    %c0_i32 = arith.constant 0 : i32
    %c0_i32_0 = arith.constant 0 : i32
    return %arg0, %c0_i32 : i32, i32
  }
}

</mosaic_0001>

<llo_original>
// kernel: tpu_custom_call.1
$region0: #{tpu_custom_call.1}
  #allocation0 [shape = 'u32[]', space=smem, size = 0x4, offset = 0x4, fixed_abs, tag = 'smem constant byte address 0x4 - core index']
  #allocation1 [shape = 'u32[72,128]{1,0:T(1,128)}', space=vmem, size = 0x9000, scoped, tag = 'internal scratch']
  %s0 = inlined_call_operand.hbm [shape: f32[16,128], index: 0, kind: input, shape index: {}]
  %s1 = inlined_call_operand.hbm [shape: f32[128,128], index: 1, kind: input, shape index: {}]
  %s2 = inlined_call_operand.hbm [shape: f32[8,128], index: 2, kind: input, shape index: {}]
  %s3 = inlined_call_operand.hbm [shape: f32[128,128], index: 3, kind: input, shape index: {}]
  %s4 = inlined_call_operand.hbm [shape: f32[8,128], index: 4, kind: input, shape index: {}]
  %s5 = inlined_call_operand.hbm [shape: f32[128,128], index: 5, kind: input, shape index: {}]
  %s6 = inlined_call_operand.hbm [shape: f32[8,128], index: 6, kind: input, shape index: {}]
  %s7 = inlined_call_operand.hbm [shape: f32[16,128], index: 7, kind: output, shape index: {}]
  %s8 = sld [smem:[#allocation0]]
  $region66: #{tpu_custom_call.1} parent=0
    _
  %s10 = ssub.s32 1, %s8
  %s11 = scalar_select 0, %s10, %s8
  $region1: #{tpu_custom_call.1} parent=0
    #allocation2 [shape = 'u8[8192]{0}', space=vmem, size = 0x2000, scoped, tag = 'input window, operand 0, single buffered']
    #allocation3 [shape = 's32[1]{0}', space=sflag, size = 0x4, scoped, tag = 'scoped memory for tpu_custom_call.1']
    #allocation4 [shape = 's32[1]{0}', space=sflag, size = 0x4, scoped, tag = 'scoped memory for tpu_custom_call.1']
    #allocation5 [shape = 'u8[65536]{0}', space=vmem, size = 0x10000, scoped, tag = 'input window, operand 1, single buffered']
    #allocation6 [shape = 's32[1]{0}', space=sflag, size = 0x4, scoped, tag = 'scoped memory for tpu_custom_call.1']
    #allocation7 [shape = 'u8[4096]{0}', space=vmem, size = 0x1000, scoped, tag = 'input window, operand 2, single buffered']
    #allocation8 [shape = 'u8[65536]{0}', space=vmem, size = 0x10000, scoped, tag = 'input window, operand 3, single buffered']
    #allocation9 [shape = 's32[1]{0}', space=sflag, size = 0x4, scoped, tag = 'scoped memory for tpu_custom_call.1']
    #allocation10 [shape = 'u8[4096]{0}', space=vmem, size = 0x1000, scoped, tag = 'input window, operand 4, single buffered']
    #allocation11 [shape = 'u8[65536]{0}', space=vmem, size = 0x10000, scoped, tag = 'input window, operand 5, single buffered']
    #allocation12 [shape = 's32[1]{0}', space=sflag, size = 0x4, scoped, tag = 'scoped memory for tpu_custom_call.1']
    #allocation13 [shape = 'u8[4096]{0}', space=vmem, size = 0x1000, scoped, tag = 'input window, operand 6, single buffered']
    #allocation14 [shape = 'u8[8192]{0}', space=vmem, size = 0x2000, scoped, tag = 'output window, operand 0, single buffered']
    %12 = vsyncpa [#allocation3], 0
    %13 = vsyncpa [#allocation6], 0
    %14 = vsyncpa [#allocation9], 0
    %15 = vsyncpa [#allocation12], 0
    %16 = vsyncpa [#allocation4], 0
    // Predicated region
    $region2: #{tpu_custom_call.1} parent=1 // pred_check
      _
    $region3: #{tpu_custom_call.1} parent=1 // pred_check_branch
      %18 = sbr.rel (0) target = $region5
    $region4: #{tpu_custom_call.1} parent=1 // pred_region
      %20 = vsyncadd [#allocation3], 0
      %s21 = sshll.u32 %s0, 4
      %s22 = int_to_ptr.hbm [resolvable:$true] %s21
      %s23 = sshll.u32 [#allocation2], 4
      %s24 = int_to_ptr.vmem [resolvable:$true] %s23
      %29 = dma.hbm_to_vmem [thread:$0]  %s22, 256, %s24, [#allocation3], 128, 128, 8
    $region5: #{tpu_custom_call.1} parent=1 // pred_fallthru
      _
    // Predicated region
    $region6: #{tpu_custom_call.1} parent=1 // pred_check
      _
    $region7: #{tpu_custom_call.1} parent=1 // pred_check_branch
      %31 = sbr.rel (0) target = $region9
    $region8: #{tpu_custom_call.1} parent=1 // pred_region
      %33 = vsyncadd [#allocation6], 0
      %s34 = sshll.u32 %s1, 4
      %s35 = int_to_ptr.hbm [resolvable:$true] %s34
      %s36 = sshll.u32 [#allocation5], 4
      %s37 = int_to_ptr.vmem [resolvable:$true] %s36
      %42 = dma.hbm_to_vmem [thread:$0]  %s35, 2048, %s37, [#allocation6], 128, 128, 8
    $region9: #{tpu_custom_call.1} parent=1 // pred_fallthru
      _
    // Predicated region
    $region10: #{tpu_custom_call.1} parent=1 // pred_check
      _
    $region11: #{tpu_custom_call.1} parent=1 // pred_check_branch
      %44 = sbr.rel (0) target = $region13
    $region12: #{tpu_custom_call.1} parent=1 // pred_region
      %46 = vsyncadd [#allocation6], 0
      %s48 = sshll.u32 %s2, 4
      %s49 = int_to_ptr.hbm [resolvable:$true] %s48
      %s50 = sshll.u32 [#allocation7], 4
      %s51 = int_to_ptr.vmem [resolvable:$true] %s50
      %53 = dma.hbm_to_vmem [thread:$0]  %s49, 128, %s51, [#allocation6]
    $region13: #{tpu_custom_call.1} parent=1 // pred_fallthru
      _
    // Predicated region
    $region14: #{tpu_custom_call.1} parent=1 // pred_check
      _
    $region15: #{tpu_custom_call.1} parent=1 // pred_check_branch
      %55 = sbr.rel (0) target = $region17
    $region16: #{tpu_custom_call.1} parent=1 // pred_region
      %57 = vsyncadd [#allocation9], 0
      %s58 = sshll.u32 %s3, 4
      %s59 = int_to_ptr.hbm [resolvable:$true] %s58
      %s60 = sshll.u32 [#allocation8], 4
      %s61 = int_to_ptr.vmem [resolvable:$true] %s60
      %66 = dma.hbm_to_vmem [thread:$0]  %s59, 2048, %s61, [#allocation9], 128, 128, 8
    $region17: #{tpu_custom_call.1} parent=1 // pred_fallthru
      _
    // Predicated region
    $region18: #{tpu_custom_call.1} parent=1 // pred_check
      _
    $region19: #{tpu_custom_call.1} parent=1 // pred_check_branch
      %68 = sbr.rel (0) target = $region21
    $region20: #{tpu_custom_call.1} parent=1 // pred_region
      %70 = vsyncadd [#allocation9], 0
      %s72 = sshll.u32 %s4, 4
      %s73 = int_to_ptr.hbm [resolvable:$true] %s72
      %s74 = sshll.u32 [#allocation10], 4
      %s75 = int_to_ptr.vmem [resolvable:$true] %s74
      %77 = dma.hbm_to_vmem [thread:$0]  %s73, 128, %s75, [#allocation9]
    $region21: #{tpu_custom_call.1} parent=1 // pred_fallthru
      _
    // Predicated region
    $region22: #{tpu_custom_call.1} parent=1 // pred_check
      _
    $region23: #{tpu_custom_call.1} parent=1 // pred_check_branch
      %79 = sbr.rel (0) target = $region25
    $region24: #{tpu_custom_call.1} parent=1 // pred_region
      %81 = vsyncadd [#allocation12], 0
      %s82 = sshll.u32 %s5, 4
      %s83 = int_to_ptr.hbm [resolvable:$true] %s82
      %s84 = sshll.u32 [#allocation11], 4
      %s85 = int_to_ptr.vmem [resolvable:$true] %s84
      %90 = dma.hbm_to_vmem [thread:$0]  %s83, 2048, %s85, [#allocation12], 128, 128, 8
    $region25: #{tpu_custom_call.1} parent=1 // pred_fallthru
      _
    // Predicated region
    $region26: #{tpu_custom_call.1} parent=1 // pred_check
      _
    $region27: #{tpu_custom_call.1} parent=1 // pred_check_branch
      %92 = sbr.rel (0) target = $region29
    $region28: #{tpu_custom_call.1} parent=1 // pred_region
      %94 = vsyncadd [#allocation12], 0
      %s96 = sshll.u32 %s6, 4
      %s97 = int_to_ptr.hbm [resolvable:$true] %s96
      %s98 = sshll.u32 [#allocation13], 4
      %s99 = int_to_ptr.vmem [resolvable:$true] %s98
      %101 = dma.hbm_to_vmem [thread:$0]  %s97, 128, %s99, [#allocation12]
    $region29: #{tpu_custom_call.1} parent=1 // pred_fallthru
      _
    // Predicated region
    $region30: #{tpu_custom_call.1} parent=1 // pred_check
      _
    $region31: #{tpu_custom_call.1} parent=1 // pred_check_branch
      %103 = sbr.rel (0) target = $region33
    $region32: #{tpu_custom_call.1} parent=1 // pred_region
      %105 = dma.done [#allocation3], 256
    $region33: #{tpu_custom_call.1} parent=1 // pred_fallthru
      _
    // Predicated region
    $region34: #{tpu_custom_call.1} parent=1 // pred_check
      _
    $region35: #{tpu_custom_call.1} parent=1 // pred_check_branch
      %107 = sbr.rel (0) target = $region37
    $region36: #{tpu_custom_call.1} parent=1 // pred_region
      %109 = dma.done [#allocation6], 2048
    $region37: #{tpu_custom_call.1} parent=1 // pred_fallthru
      _
    // Predicated region
    $region38: #{tpu_custom_call.1} parent=1 // pred_check
      _
    $region39: #{tpu_custom_call.1} parent=1 // pred_check_branch
      %111 = sbr.rel (0) target = $region41
    $region40: #{tpu_custom_call.1} parent=1 // pred_region
      %113 = dma.done [#allocation6], 128
    $region41: #{tpu_custom_call.1} parent=1 // pred_fallthru
      _
    // Predicated region
    $region42: #{tpu_custom_call.1} parent=1 // pred_check
      _
    $region43: #{tpu_custom_call.1} parent=1 // pred_check_branch
      %115 = sbr.rel (0) target = $region45
    $region44: #{tpu_custom_call.1} parent=1 // pred_region
      %117 = dma.done [#allocation9], 2048
    $region45: #{tpu_custom_call.1} parent=1 // pred_fallthru
      _
    // Predicated region
    $region46: #{tpu_custom_call.1} parent=1 // pred_check
      _
    $region47: #{tpu_custom_call.1} parent=1 // pred_check_branch
      %119 = sbr.rel (0) target = $region49
    $region48: #{tpu_custom_call.1} parent=1 // pred_region
      %121 = dma.done [#allocation9], 128
    $region49: #{tpu_custom_call.1} parent=1 // pred_fallthru
      _
    // Predicated region
    $region50: #{tpu_custom_call.1} parent=1 // pred_check
      _
    $region51: #{tpu_custom_call.1} parent=1 // pred_check_branch
      %123 = sbr.rel (0) target = $region53
    $region52: #{tpu_custom_call.1} parent=1 // pred_region
      %125 = dma.done [#allocation12], 2048
    $region53: #{tpu_custom_call.1} parent=1 // pred_fallthru
      _
    // Predicated region
    $region54: #{tpu_custom_call.1} parent=1 // pred_check
      _
    $region55: #{tpu_custom_call.1} parent=1 // pred_check_branch
      %127 = sbr.rel (0) target = $region57
    $region56: #{tpu_custom_call.1} parent=1 // pred_region
      %129 = dma.done [#allocation12], 128
    $region57: #{tpu_custom_call.1} parent=1 // pred_fallthru
      _
    %v130 = vld [vmem:[#allocation2] sm:$0xff]
    %v131 = vld [vmem:[#allocation2 + $0x8] sm:$0xff]
    %v132 = vld [vmem:[#allocation5] sm:$0xff]
    %v133 = vld [vmem:[#allocation5 + $0x8] sm:$0xff]
    %v134 = vld [vmem:[#allocation5 + $0x10] sm:$0xff]
    %v135 = vld [vmem:[#allocation5 + $0x18] sm:$0xff]
    %v136 = vld [vmem:[#allocation5 + $0x20] sm:$0xff]
    %v137 = vld [vmem:[#allocation5 + $0x28] sm:$0xff]
    %v138 = vld [vmem:[#allocation5 + $0x30] sm:$0xff]
    %v139 = vld [vmem:[#allocation5 + $0x38] sm:$0xff]
    %v140 = vld [vmem:[#allocation5 + $0x40] sm:$0xff]
    %v141 = vld [vmem:[#allocation5 + $0x48] sm:$0xff]
    %v142 = vld [vmem:[#allocation5 + $0x50] sm:$0xff]
    %v143 = vld [vmem:[#allocation5 + $0x58] sm:$0xff]
    %v144 = vld [vmem:[#allocation5 + $0x60] sm:$0xff]
    %v145 = vld [vmem:[#allocation5 + $0x68] sm:$0xff]
    %v146 = vld [vmem:[#allocation5 + $0x70] sm:$0xff]
    %v147 = vld [vmem:[#allocation5 + $0x78] sm:$0xff]
    %v148 = vld [vmem:[#allocation7] sm:$0xff]
    %v149 = vperm.slane %v148, 0
    %150 = vmatpush.msra.mxu0 %v147
    %151 = vmatpush.msra.mxu0 %v146
    %152 = vmatpush.msra.mxu0 %v145
    %153 = vmatpush.msra.mxu0 %v144
    %154 = vmatpush.msra.mxu0 %v143
    %155 = vmatpush.msra.mxu0 %v142
    %156 = vmatpush.msra.mxu0 %v141
    %157 = vmatpush.msra.mxu0 %v140
    %158 = vmatpush.msra.mxu0 %v139
    %159 = vmatpush.msra.mxu0 %v138
    %160 = vmatpush.msra.mxu0 %v137
    %161 = vmatpush.msra.mxu0 %v136
    %162 = vmatpush.msra.mxu0 %v135
    %163 = vmatpush.msra.mxu0 %v134
    %164 = vmatpush.msra.mxu0 %v133
    %165 = vmatpush.msra.mxu0 %v132
    %166 = vmatmul.f32.gmra.mxu0 %v130
    %v167 = vpop.f32.mrf.mxu0
    %v168 = vadd.f32 %v149, %v167
    %169 = vmatmul.f32.gmra.mxu0 %v131
    %v170 = vpop.f32.mrf.mxu0
    %v171 = vadd.f32 %v149, %v170
    %172 = vdwg.mxu0
    %v173 = vxor.u32 %v168, 2147483648
    %v174 = vxor.u32 %v171, 2147483648
    %v175 = vmul.f32 %v173, 1.442695
    %v176 = vpow.pop %v175
    %v177 = vmul.f32 %v174, 1.442695
    %v178 = vpow.pop %v177
    %v179 = vadd.f32 %v176, 1.0
    %v180 = vadd.f32 %v178, 1.0
    %v181 = vrcp.pop %v179
    %v182 = vmul.f32 %v179, %v181
    %v183 = vsub.f32 1.0, %v182
    %v184 = vmul.f32 %v181, %v183
    %v185 = vadd.f32 %v181, %v184
    %vm186 = vweird.f32 %v179
    %vm187 = vweird.f32 %v181
    %vm188 = vmor %vm186, %vm187
    %v189 = vsel %vm188, %v181, %v185
    %v190 = vand.u32 2147483647, %v179
    %vm191 = vcmp.eq.f32.partialorder %v190, 8.507059e+37
    %v192 = vand.u32 %v179, 2147483648
    %v193 = vor.u32 1.1754944e-38, %v192
    %v194 = vsel %vm191, %v193, %v189
    %v195 = vmul.f32 1.0, %v194
    %v196 = vrcp.pop %v180
    %v197 = vmul.f32 %v180, %v196
    %v198 = vsub.f32 1.0, %v197
    %v199 = vmul.f32 %v196, %v198
    %v200 = vadd.f32 %v196, %v199
    %vm201 = vweird.f32 %v180
    %vm202 = vweird.f32 %v196
    %vm203 = vmor %vm201, %vm202
    %v204 = vsel %vm203, %v196, %v200
    %v205 = vand.u32 2147483647, %v180
    %vm206 = vcmp.eq.f32.partialorder %v205, 8.507059e+37
    %v207 = vand.u32 %v180, 2147483648
    %v208 = vor.u32 1.1754944e-38, %v207
    %v209 = vsel %vm206, %v208, %v204
    %v210 = vmul.f32 1.0, %v209
    %v211 = vlaneseq
    %v212 = vand.u32 %v211, 127
    %vm213 = vcmp.lt.s32.totalorder %v212, 32
    %v214 = vsel %vm213, 1, 0
    %vm215 = vcmp.eq.s32.totalorder %v214, 1
    %v216 = vsel %vm215, %v195, 0.0
    %v217 = vsel %vm215, %v210, 0.0
    %218 = vadd.xlane.f32.xlu0 %v216
    %v219 = vpop.xlane.xlu0 %218
    %220 = vadd.xlane.f32.xlu0 %v217
    %v221 = vpop.xlane.xlu0 %220
    %v222 = vmul.f32 %v219, 0.03125
    %v223 = vmul.f32 %v221, 0.03125
    %v224 = vmul.f32 %v216, %v216
    %v225 = vmul.f32 %v217, %v217
    %226 = vadd.xlane.f32.xlu0 %v224
    %v227 = vpop.xlane.xlu0 %226
    %228 = vadd.xlane.f32.xlu0 %v225
    %v229 = vpop.xlane.xlu0 %228
    %v230 = vmul.f32 %v227, 0.03125
    %v231 = vmul.f32 %v229, 0.03125
    %v232 = vmul.f32 %v222, %v222
    %v233 = vmul.f32 %v223, %v223
    %v234 = vsub.f32 %v230, %v232
    %v235 = vsub.f32 %v231, %v233
    %v236 = vsub.f32 %v216, %v222
    %v237 = vsub.f32 %v217, %v223
    %v238 = vadd.f32 %v234, 1e-05
    %v239 = vadd.f32 %v235, 1e-05
    %v240 = vrsqrt.pop %v238
    %v241 = vmul.f32 %v240, %v238
    %v242 = vmul.f32 %v241, %v240
    %v243 = vmul.f32 0.5, %v242
    %v244 = vsub.f32 1.5, %v243
    %v245 = vmul.f32 %v240, %v244
    %vm246 = vweird.f32 %v238
    %vm247 = vweird.f32 %v240
    %vm248 = vmor %vm246, %vm247
    %v249 = vsel %vm248, %v240, %v245
    %v250 = vrsqrt.pop %v239
    %v251 = vmul.f32 %v250, %v239
    %v252 = vmul.f32 %v251, %v250
    %v253 = vmul.f32 0.5, %v252
    %v254 = vsub.f32 1.5, %v253
    %v255 = vmul.f32 %v250, %v254
    %vm256 = vweird.f32 %v239
    %vm257 = vweird.f32 %v250
    %vm258 = vmor %vm256, %vm257
    %v259 = vsel %vm258, %v250, %v255
    %v260 = vmul.f32 %v236, %v249
    %v261 = vmul.f32 %v237, %v259
    %v262 = vperm.slane %v148, 1
    %v263 = vmul.f32 %v260, %v262
    %v264 = vmul.f32 %v261, %v262
    %v265 = vperm.slane %v148, 2
    %v266 = vadd.f32 %v263, %v265
    %v267 = vadd.f32 %v264, %v265
    %v268 = vld [vmem:[#allocation8] sm:$0xff]
    %v269 = vld [vmem:[#allocation8 + $0x8] sm:$0xff]
    %v270 = vld [vmem:[#allocation8 + $0x10] sm:$0xff]
    %v271 = vld [vmem:[#allocation8 + $0x18] sm:$0xff]
    %v272 = vld [vmem:[#allocation8 + $0x20] sm:$0xff]
    %v273 = vld [vmem:[#allocation8 + $0x28] sm:$0xff]
    %v274 = vld [vmem:[#allocation8 + $0x30] sm:$0xff]
    %v275 = vld [vmem:[#allocation8 + $0x38] sm:$0xff]
    %v276 = vld [vmem:[#allocation8 + $0x40] sm:$0xff]
    %v277 = vld [vmem:[#allocation8 + $0x48] sm:$0xff]
    %v278 = vld [vmem:[#allocation8 + $0x50] sm:$0xff]
    %v279 = vld [vmem:[#allocation8 + $0x58] sm:$0xff]
    %v280 = vld [vmem:[#allocation8 + $0x60] sm:$0xff]
    %v281 = vld [vmem:[#allocation8 + $0x68] sm:$0xff]
    %v282 = vld [vmem:[#allocation8 + $0x70] sm:$0xff]
    %v283 = vld [vmem:[#allocation8 + $0x78] sm:$0xff]
    %v284 = vld [vmem:[#allocation10] sm:$0xff]
    %v285 = vperm.slane %v284, 0
    %286 = vmatpush.msra.mxu0 %v283
    %287 = vmatpush.msra.mxu0 %v282
    %288 = vmatpush.msra.mxu0 %v281
    %289 = vmatpush.msra.mxu0 %v280
    %290 = vmatpush.msra.mxu0 %v279
    %291 = vmatpush.msra.mxu0 %v278
    %292 = vmatpush.msra.mxu0 %v277
    %293 = vmatpush.msra.mxu0 %v276
    %294 = vmatpush.msra.mxu0 %v275
    %295 = vmatpush.msra.mxu0 %v274
    %296 = vmatpush.msra.mxu0 %v273
    %297 = vmatpush.msra.mxu0 %v272
    %298 = vmatpush.msra.mxu0 %v271
    %299 = vmatpush.msra.mxu0 %v270
    %300 = vmatpush.msra.mxu0 %v269
    %301 = vmatpush.msra.mxu0 %v268
    %302 = vmatmul.f32.gmra.mxu0 %v266
    %v303 = vpop.f32.mrf.mxu0
    %v304 = vadd.f32 %v285, %v303
    %305 = vmatmul.f32.gmra.mxu0 %v267
    %v306 = vpop.f32.mrf.mxu0
    %v307 = vadd.f32 %v285, %v306
    %308 = vdwg.mxu0
    %v309 = vxor.u32 %v304, 2147483648
    %v310 = vxor.u32 %v307, 2147483648
    %v311 = vmul.f32 %v309, 1.442695
    %v312 = vpow.pop %v311
    %v313 = vmul.f32 %v310, 1.442695
    %v314 = vpow.pop %v313
    %v315 = vadd.f32 %v312, 1.0
    %v316 = vadd.f32 %v314, 1.0
    %v317 = vrcp.pop %v315
    %v318 = vmul.f32 %v315, %v317
    %v319 = vsub.f32 1.0, %v318
    %v320 = vmul.f32 %v317, %v319
    %v321 = vadd.f32 %v317, %v320
    %vm322 = vweird.f32 %v315
    %vm323 = vweird.f32 %v317
    %vm324 = vmor %vm322, %vm323
    %v325 = vsel %vm324, %v317, %v321
    %v326 = vand.u32 2147483647, %v315
    %vm327 = vcmp.eq.f32.partialorder %v326, 8.507059e+37
    %v328 = vand.u32 %v315, 2147483648
    %v329 = vor.u32 1.1754944e-38, %v328
    %v330 = vsel %vm327, %v329, %v325
    %v331 = vmul.f32 1.0, %v330
    %v332 = vrcp.pop %v316
    %v333 = vmul.f32 %v316, %v332
    %v334 = vsub.f32 1.0, %v333
    %v335 = vmul.f32 %v332, %v334
    %v336 = vadd.f32 %v332, %v335
    %vm337 = vweird.f32 %v316
    %vm338 = vweird.f32 %v332
    %vm339 = vmor %vm337, %vm338
    %v340 = vsel %vm339, %v332, %v336
    %v341 = vand.u32 2147483647, %v316
    %vm342 = vcmp.eq.f32.partialorder %v341, 8.507059e+37
    %v343 = vand.u32 %v316, 2147483648
    %v344 = vor.u32 1.1754944e-38, %v343
    %v345 = vsel %vm342, %v344, %v340
    %v346 = vmul.f32 1.0, %v345
    %v347 = vsel %vm215, %v331, 0.0
    %v348 = vsel %vm215, %v346, 0.0
    %v349 = vadd.f32 %v347, %v266
    %v350 = vadd.f32 %v348, %v267
    %351 = vadd.xlane.f32.xlu0 %v349
    %v352 = vpop.xlane.xlu0 %351
    %353 = vadd.xlane.f32.xlu0 %v350
    %v354 = vpop.xlane.xlu0 %353
    %v355 = vmul.f32 %v352, 0.03125
    %v356 = vmul.f32 %v354, 0.03125
    %v357 = vmul.f32 %v349, %v349
    %v358 = vmul.f32 %v350, %v350
    %359 = vadd.xlane.f32.xlu0 %v357
    %v360 = vpop.xlane.xlu0 %359
    %361 = vadd.xlane.f32.xlu0 %v358
    %v362 = vpop.xlane.xlu0 %361
    %v363 = vmul.f32 %v360, 0.03125
    %v364 = vmul.f32 %v362, 0.03125
    %v365 = vmul.f32 %v355, %v355
    %v366 = vmul.f32 %v356, %v356
    %v367 = vsub.f32 %v363, %v365
    %v368 = vsub.f32 %v364, %v366
    %v369 = vsub.f32 %v349, %v355
    %v370 = vsub.f32 %v350, %v356
    %v371 = vadd.f32 %v367, 1e-05
    %v372 = vadd.f32 %v368, 1e-05
    %v373 = vrsqrt.pop %v371
    %v374 = vmul.f32 %v373, %v371
    %v375 = vmul.f32 %v374, %v373
    %v376 = vmul.f32 0.5, %v375
    %v377 = vsub.f32 1.5, %v376
    %v378 = vmul.f32 %v373, %v377
    %vm379 = vweird.f32 %v371
    %vm380 = vweird.f32 %v373
    %vm381 = vmor %vm379, %vm380
    %v382 = vsel %vm381, %v373, %v378
    %v383 = vrsqrt.pop %v372
    %v384 = vmul.f32 %v383, %v372
    %v385 = vmul.f32 %v384, %v383
    %v386 = vmul.f32 0.5, %v385
    %v387 = vsub.f32 1.5, %v386
    %v388 = vmul.f32 %v383, %v387
    %vm389 = vweird.f32 %v372
    %vm390 = vweird.f32 %v383
    %vm391 = vmor %vm389, %vm390
    %v392 = vsel %vm391, %v383, %v388
    %v393 = vmul.f32 %v369, %v382
    %v394 = vmul.f32 %v370, %v392
    %v395 = vperm.slane %v284, 1
    %v396 = vmul.f32 %v393, %v395
    %v397 = vmul.f32 %v394, %v395
    %v398 = vperm.slane %v284, 2
    %v399 = vadd.f32 %v396, %v398
    %v400 = vadd.f32 %v397, %v398
    %v401 = vld [vmem:[#allocation11] sm:$0xff]
    %v402 = vld [vmem:[#allocation11 + $0x8] sm:$0xff]
    %v403 = vld [vmem:[#allocation11 + $0x10] sm:$0xff]
    %v404 = vld [vmem:[#allocation11 + $0x18] sm:$0xff]
    %v405 = vld [vmem:[#allocation11 + $0x20] sm:$0xff]
    %v406 = vld [vmem:[#allocation11 + $0x28] sm:$0xff]
    %v407 = vld [vmem:[#allocation11 + $0x30] sm:$0xff]
    %v408 = vld [vmem:[#allocation11 + $0x38] sm:$0xff]
    %v409 = vld [vmem:[#allocation11 + $0x40] sm:$0xff]
    %v410 = vld [vmem:[#allocation11 + $0x48] sm:$0xff]
    %v411 = vld [vmem:[#allocation11 + $0x50] sm:$0xff]
    %v412 = vld [vmem:[#allocation11 + $0x58] sm:$0xff]
    %v413 = vld [vmem:[#allocation11 + $0x60] sm:$0xff]
    %v414 = vld [vmem:[#allocation11 + $0x68] sm:$0xff]
    %v415 = vld [vmem:[#allocation11 + $0x70] sm:$0xff]
    %v416 = vld [vmem:[#allocation11 + $0x78] sm:$0xff]
    %v417 = vld [vmem:[#allocation13] sm:$0xff]
    %v418 = vperm.slane %v417, 0
    %419 = vmatpush.msra.mxu0 %v416
    %420 = vmatpush.msra.mxu0 %v415
    %421 = vmatpush.msra.mxu0 %v414
    %422 = vmatpush.msra.mxu0 %v413
    %423 = vmatpush.msra.mxu0 %v412
    %424 = vmatpush.msra.mxu0 %v411
    %425 = vmatpush.msra.mxu0 %v410
    %426 = vmatpush.msra.mxu0 %v409
    %427 = vmatpush.msra.mxu0 %v408
    %428 = vmatpush.msra.mxu0 %v407
    %429 = vmatpush.msra.mxu0 %v406
    %430 = vmatpush.msra.mxu0 %v405
    %431 = vmatpush.msra.mxu0 %v404
    %432 = vmatpush.msra.mxu0 %v403
    %433 = vmatpush.msra.mxu0 %v402
    %434 = vmatpush.msra.mxu0 %v401
    %435 = vmatmul.f32.gmra.mxu0 %v399
    %v436 = vpop.f32.mrf.mxu0
    %v437 = vadd.f32 %v418, %v436
    %438 = vmatmul.f32.gmra.mxu0 %v400
    %v439 = vpop.f32.mrf.mxu0
    %v440 = vadd.f32 %v418, %v439
    %441 = vdwg.mxu0
    %v442 = vxor.u32 %v437, 2147483648
    %v443 = vxor.u32 %v440, 2147483648
    %v444 = vmul.f32 %v442, 1.442695
    %v445 = vpow.pop %v444
    %v446 = vmul.f32 %v443, 1.442695
    %v447 = vpow.pop %v446
    %v448 = vadd.f32 %v445, 1.0
    %v449 = vadd.f32 %v447, 1.0
    %v450 = vrcp.pop %v448
    %v451 = vmul.f32 %v448, %v450
    %v452 = vsub.f32 1.0, %v451
    %v453 = vmul.f32 %v450, %v452
    %v454 = vadd.f32 %v450, %v453
    %vm455 = vweird.f32 %v448
    %vm456 = vweird.f32 %v450
    %vm457 = vmor %vm455, %vm456
    %v458 = vsel %vm457, %v450, %v454
    %v459 = vand.u32 2147483647, %v448
    %vm460 = vcmp.eq.f32.partialorder %v459, 8.507059e+37
    %v461 = vand.u32 %v448, 2147483648
    %v462 = vor.u32 1.1754944e-38, %v461
    %v463 = vsel %vm460, %v462, %v458
    %v464 = vmul.f32 1.0, %v463
    %v465 = vrcp.pop %v449
    %v466 = vmul.f32 %v449, %v465
    %v467 = vsub.f32 1.0, %v466
    %v468 = vmul.f32 %v465, %v467
    %v469 = vadd.f32 %v465, %v468
    %vm470 = vweird.f32 %v449
    %vm471 = vweird.f32 %v465
    %vm472 = vmor %vm470, %vm471
    %v473 = vsel %vm472, %v465, %v469
    %v474 = vand.u32 2147483647, %v449
    %vm475 = vcmp.eq.f32.partialorder %v474, 8.507059e+37
    %v476 = vand.u32 %v449, 2147483648
    %v477 = vor.u32 1.1754944e-38, %v476
    %v478 = vsel %vm475, %v477, %v473
    %v479 = vmul.f32 1.0, %v478
    %vm480 = vcmp.lt.s32.totalorder %v212, 8
    %v481 = vsel %vm480, 1, 0
    %vm482 = vcmp.eq.s32.totalorder %v481, 1
    %v483 = vsel %vm482, %v464, 0.0
    %v484 = vsel %vm482, %v479, 0.0
    %485 = vst [vmem:[#allocation14] sm:$0xff] %v483
    %486 = vst [vmem:[#allocation14 + $0x8] sm:$0xff] %v484
    // Predicated region
    $region58: #{tpu_custom_call.1} parent=1 // pred_check
      _
    $region59: #{tpu_custom_call.1} parent=1 // pred_check_branch
      %488 = sbr.rel (0) target = $region61
    $region60: #{tpu_custom_call.1} parent=1 // pred_region
      %490 = vsyncadd [#allocation4], 0
      %s491 = sshll.u32 [#allocation14], 4
      %s492 = int_to_ptr.vmem [resolvable:$true] %s491
      %s493 = sshll.u32 %s7, 4
      %s494 = int_to_ptr.hbm [resolvable:$true] %s493
      %499 = dma.vmem_to_hbm [thread:$0]  %s492, 256, %s494, [#allocation4], 128, 128, 8
    $region61: #{tpu_custom_call.1} parent=1 // pred_fallthru
      _
    // Predicated region
    $region62: #{tpu_custom_call.1} parent=1 // pred_check
      _
    $region63: #{tpu_custom_call.1} parent=1 // pred_check_branch
      %501 = sbr.rel (0) target = $region65
    $region64: #{tpu_custom_call.1} parent=1 // pred_region
      %503 = dma.done [#allocation4], 256
    $region65: #{tpu_custom_call.1} parent=1 // pred_fallthru
      _
    %504 = vsyncpa [#allocation3], 1
    %505 = vsyncpa [#allocation6], 1
    %506 = vsyncpa [#allocation9], 1
    %507 = vsyncpa [#allocation12], 1
    %508 = vsyncpa [#allocation4], 1

</llo_original>
